<compile_context>
chip_gen: v6e
topology: v6e:2x2x1
jax: 0.10.0
libtpu: 0.0.40
codegen_flags: <defaults>
</compile_context>

<pallas_src>
import functools
import math

import jax
import jax.numpy as jnp
from jax.experimental import pallas as pl
from jax.experimental.pallas import tpu as pltpu


def _round_up(v, m):
    return ((v + m - 1) // m) * m


def _cdiv(a, b):
    return (a + b - 1) // b


def _usable_vmem_bytes():
    """Generation-aware VMEM budget: chip capacity minus headroom for Mosaic
    internal scratch (~112 MiB usable on v5e/v6e's 128 MiB, ~56 MiB on v7x)."""
    cap = 64 << 20  # conservative fallback (v7x per-core)
    try:
        cap = int(getattr(pltpu.get_tpu_info(), "vmem_capacity_bytes", cap))
    except Exception:
        pass
    return int(cap - max(8 << 20, cap // 8))


# ----------------------------------------------------------------------------
# Kernels
# ----------------------------------------------------------------------------
def _linear_kernel(x_ref, wt_ref, b_ref, o_ref):
    """One (tm, tn) output tile: y = x @ W^T + b (f32 MXU accumulation)."""
    acc = jnp.dot(x_ref[...], wt_ref[...], preferred_element_type=jnp.float32)
    o_ref[...] = (acc + b_ref[...].astype(jnp.float32)).astype(o_ref.dtype)


def _linear_kernel_ktiled(x_ref, wt_ref, b_ref, o_ref, acc_ref):
    """K-tiled variant: accumulate partial products in f32 VMEM scratch, add
    the bias and write the output on the last K step."""
    k = pl.program_id(2)

    @pl.when(k == 0)
    def _init():
        acc_ref[...] = jnp.zeros_like(acc_ref)

    acc_ref[...] += jnp.dot(x_ref[...], wt_ref[...],
                            preferred_element_type=jnp.float32)

    @pl.when(k == pl.num_programs(2) - 1)
    def _finalize():
        o_ref[...] = (acc_ref[...] + b_ref[...].astype(jnp.float32)).astype(o_ref.dtype)


# ----------------------------------------------------------------------------
# Parameter layout (done once, off the hot path)
# ----------------------------------------------------------------------------
def _pick_weight_tiles(input_dim, num_classes, w_itemsize, usable_vmem):
    """Choose column tile tn and contraction tile tk so the double-buffered
    weight tile never exceeds half of the VMEM budget (v7x: 64 MiB total)."""
    c_pad = max(128, _round_up(num_classes, 128))
    budget = max(usable_vmem // 2, 4 << 20)
    tn = c_pad
    tk = input_dim
    # Shrink the output-column tile first (x stays resident across column tiles).
    while tn > 128 and 2 * tk * tn * w_itemsize > budget:
        tn = max(128, _round_up(tn // 2, 128))
    # Still too big (very large input_dim): tile the contraction axis too.
    if 2 * tk * tn * w_itemsize > budget:
        tk = max(128, ((budget // (2 * tn * w_itemsize)) // 128) * 128)
    c_pad = _round_up(c_pad, tn)
    d_pad = input_dim if tk == input_dim else _round_up(input_dim, tk)
    return int(tn), int(c_pad), int(tk), int(d_pad)


def prepare_classifier_params(weight, bias, usable_vmem=None):
    """Lay out nn.Linear params once: W^T zero-padded to [D_pad, C_pad]
    (lane-dense, C_pad multiple of 128) and bias to [1, C_pad]."""
    num_classes, input_dim = weight.shape
    if usable_vmem is None:
        usable_vmem = _usable_vmem_bytes()
    w_item = jnp.dtype(weight.dtype).itemsize
    tn, c_pad, tk, d_pad = _pick_weight_tiles(input_dim, num_classes, w_item,
                                              usable_vmem)
    wt = jnp.zeros((d_pad, c_pad), dtype=weight.dtype)
    wt = wt.at[:input_dim, :num_classes].set(weight.T)
    b2d = jnp.zeros((1, c_pad), dtype=bias.dtype).at[0, :num_classes].set(bias)
    return dict(wt=wt, b2d=b2d, num_classes=int(num_classes),
                input_dim=int(input_dim), tn=tn, tk=tk, d_pad=d_pad,
                usable_vmem=int(usable_vmem))


# ----------------------------------------------------------------------------
# Forward
# ----------------------------------------------------------------------------
@functools.partial(
    jax.jit,
    static_argnames=("num_classes", "input_dim", "tn", "tk", "d_pad",
                     "block_rows", "usable_vmem"),
)
def _classifier_forward(x, wt, b2d, *, num_classes, input_dim, tn, tk, d_pad,
                        block_rows, usable_vmem):
    *lead, d = x.shape
    assert d == input_dim, (d, input_dim)
    rows = int(math.prod(lead)) if lead else 1
    x2d = x.reshape(rows, d)

    c_pad = wt.shape[1]
    nj = c_pad // tn
    nk = d_pad // tk

    x_item = jnp.dtype(x.dtype).itemsize
    w_item = jnp.dtype(wt.dtype).itemsize
    b_item = jnp.dtype(b2d.dtype).itemsize
    out_item = x_item

    # Sublane packing granularity (f32 -> 8, bf16 -> 16, int8/fp8 -> 32).
    sublane = max(8, 32 // x_item)

    # ---- row tile selection (near-equal tiles, minimal padding) ----
    rows_pad = _round_up(rows, sublane)
    # Pallas double-buffers every input/output: count them 2x.
    w_foot = 2 * tk * tn * w_item
    b_foot = 2 * tn * b_item
    per_row = 2 * tk * x_item + 2 * tn * out_item + (tn * 4 if nk > 1 else 0)
    rem = usable_vmem - w_foot - b_foot - (6 << 20)  # Mosaic internal-scratch margin
    tm_cap = max(sublane,
                 (max(rem, per_row * sublane) // per_row) // sublane * sublane)
    tm_max = max(sublane, min(_round_up(block_rows, sublane), tm_cap))
    ni = _cdiv(rows_pad, tm_max)
    # >= 2 row tiles for moderate batches so "parallel" can feed both v7x TCs
    # (each tile still >= 128 rows); v5e/v6e are single-TC, cost is negligible.
    if ni == 1 and rows_pad >= 256:
        ni = 2
    tm = _round_up(_cdiv(rows_pad, ni), sublane)   # tm <= tm_max by construction
    rows_final = tm * ni

    if rows_final != rows or d_pad != d:
        x2d = jnp.zeros((rows_final, d_pad), dtype=x.dtype).at[:rows, :d].set(x2d)

    cost = pl.CostEstimate(
        flops=2 * rows_final * d_pad * c_pad,
        transcendentals=0,
        bytes_accessed=(rows_final * d_pad * x_item + d_pad * c_pad * w_item
                        + c_pad * b_item + rows_final * c_pad * out_item),
    )

    if nk > 1:
        out = pl.pallas_call(
            _linear_kernel_ktiled,
            out_shape=jax.ShapeDtypeStruct((rows_final, c_pad), x.dtype),
            grid=(ni, nj, nk),
            in_specs=[
                pl.BlockSpec((tm, tk), lambda i, j, k: (i, k)),   # streamed activations
                pl.BlockSpec((tk, tn), lambda i, j, k: (k, j)),   # weight tile
                pl.BlockSpec((1, tn), lambda i, j, k: (0, j)),    # bias tile
            ],
            out_specs=pl.BlockSpec((tm, tn), lambda i, j, k: (i, j)),
            scratch_shapes=[pltpu.VMEM((tm, tn), jnp.float32)],
            compiler_params=pltpu.CompilerParams(
                dimension_semantics=("parallel", "parallel", "arbitrary"),
                vmem_limit_bytes=int(usable_vmem)),
            cost_estimate=cost,
        )(x2d, wt, b2d)
    else:
        out = pl.pallas_call(
            _linear_kernel,
            out_shape=jax.ShapeDtypeStruct((rows_final, c_pad), x.dtype),
            grid=(ni, nj),
            in_specs=[
                pl.BlockSpec((tm, tk), lambda i, j: (i, 0)),      # streamed activations
                pl.BlockSpec((tk, tn), lambda i, j: (0, j)),      # resident / col-tiled W^T
                pl.BlockSpec((1, tn), lambda i, j: (0, j)),       # bias
            ],
            out_specs=pl.BlockSpec((tm, tn), lambda i, j: (i, j)),
            compiler_params=pltpu.CompilerParams(
                dimension_semantics=("parallel", "parallel"),
                vmem_limit_bytes=int(usable_vmem)),
            cost_estimate=cost,
        )(x2d, wt, b2d)

    return out[:rows, :num_classes].reshape(*lead, num_classes)


class Classifier:
    """Pallas-TPU port of the PyTorch Classifier (single nn.Linear)."""

    def __init__(self, weight, bias, *, block_rows=1024):
        # weight: [num_classes, input_dim] (PyTorch nn.Linear layout), bias: [num_classes]
        self._p = prepare_classifier_params(weight, bias)
        self._block_rows = int(block_rows)

    def __call__(self, x):
        p = self._p
        return _classifier_forward(
            x, p["wt"], p["b2d"],
            num_classes=p["num_classes"], input_dim=p["input_dim"],
            tn=p["tn"], tk=p["tk"], d_pad=p["d_pad"],
            block_rows=self._block_rows, usable_vmem=p["usable_vmem"])


if __name__ == "__main__":
    # Small shapes consistent with the forward: batch=8, input_dim=32, classes=4.
    B, D, C = 8, 32, 4

    key = jax.random.PRNGKey(0)
    kx, kw, kb, kx2 = jax.random.split(key, 4)

    x = jax.random.normal(kx, (B, D), dtype=jnp.float32)
    weight = jax.random.normal(kw, (C, D), dtype=jnp.float32) * (1.0 / jnp.sqrt(D))
    bias = jax.random.normal(kb, (C,), dtype=jnp.float32) * 0.01

    clf = Classifier(weight, bias)

    y = jax.block_until_ready(clf(x))
    ref = x @ weight.T + bias
    assert y.shape == (B, C), y.shape
    assert jnp.allclose(y, ref, atol=1e-5, rtol=1e-5), float(jnp.max(jnp.abs(y - ref)))

    # Leading-dim / ragged-row case (exercises the sublane row padding path).
    x2 = jax.random.normal(kx2, (2, 7, D), dtype=jnp.float32)
    y2 = jax.block_until_ready(clf(x2))
    ref2 = x2 @ weight.T + bias
    assert y2.shape == (2, 7, C), y2.shape
    assert jnp.allclose(y2, ref2, atol=1e-5, rtol=1e-5), float(jnp.max(jnp.abs(y2 - ref2)))

    print("KERNEL_OK")
</pallas_src>

<mosaic_0001>
module attributes {stable_mosaic.version = 11 : i64} {
  func.func @_linear_kernel(%arg0: i32, %arg1: i32, %arg2: memref<8x32xf32, #tpu.memory_space<vmem>>, %arg3: memref<32x128xf32, #tpu.memory_space<vmem>>, %arg4: memref<1x128xf32, #tpu.memory_space<vmem>>, %arg5: memref<8x128xf32, #tpu.memory_space<vmem>>) attributes {dimension_semantics = [#tpu.dimension_semantics<parallel>, #tpu.dimension_semantics<parallel>], iteration_bounds = array<i64: 1, 1>, scalar_prefetch = 0 : i64, scratch_operands = 0 : i64, tpu.core_type = #tpu.core_type<tc>, window_params = [{transform_indices = @transform_0, window_bounds = array<i64: 8, 32>}, {transform_indices = @transform_1, window_bounds = array<i64: 32, 128>}, {transform_indices = @transform_2, window_bounds = array<i64: 1, 128>}, {transform_indices = @transform_3, window_bounds = array<i64: 8, 128>}]} {
    %c0 = arith.constant 0 : index
    %c0_0 = arith.constant 0 : index
    %0 = vector.load %arg2[%c0, %c0_0] : memref<8x32xf32, #tpu.memory_space<vmem>>, vector<8x32xf32>
    %c0_1 = arith.constant 0 : index
    %c0_2 = arith.constant 0 : index
    %1 = vector.load %arg3[%c0_1, %c0_2] : memref<32x128xf32, #tpu.memory_space<vmem>>, vector<32x128xf32>
    %cst = arith.constant dense<0.000000e+00> : vector<8x128xf32>
    %2 = tpu.matmul %0, %1, %cst {dimension_numbers = #tpu.dot_dimension_numbers<[1], [0], [0], [1], [0, 0, 1, 1], [], []>} : vector<8x32xf32>, vector<32x128xf32>, vector<8x128xf32> -> vector<8x128xf32>
    %c0_3 = arith.constant 0 : index
    %c0_4 = arith.constant 0 : index
    %3 = vector.load %arg4[%c0_3, %c0_4] : memref<1x128xf32, #tpu.memory_space<vmem>>, vector<1x128xf32>
    %4 = vector.broadcast %3 : vector<1x128xf32> to vector<8x128xf32>
    %5 = arith.addf %2, %4 : vector<8x128xf32>
    %c0_5 = arith.constant 0 : index
    %c0_6 = arith.constant 0 : index
    %6 = vector.load %arg5[%c0_5, %c0_6] : memref<8x128xf32, #tpu.memory_space<vmem>>, vector<8x128xf32>
    tpu.vector_store %arg5[%c0_5, %c0_6], %5 {strides = array<i32>} : memref<8x128xf32, #tpu.memory_space<vmem>>, vector<8x128xf32>,
    return
  }
  func.func @transform_0(%arg0: i32, %arg1: i32) -> (i32, i32) {
    %c0_i32 = arith.constant 0 : i32
    %c0_i32_0 = arith.constant 0 : i32
    return %arg0, %c0_i32 : i32, i32
  }
  func.func @transform_1(%arg0: i32, %arg1: i32) -> (i32, i32) {
    %c0_i32 = arith.constant 0 : i32
    %c0_i32_0 = arith.constant 0 : i32
    return %c0_i32, %arg1 : i32, i32
  }
  func.func @transform_2(%arg0: i32, %arg1: i32) -> (i32, i32) {
    %c0_i32 = arith.constant 0 : i32
    %c0_i32_0 = arith.constant 0 : i32
    return %c0_i32, %arg1 : i32, i32
  }
  func.func @transform_3(%arg0: i32, %arg1: i32) -> (i32, i32) {
    %c0_i32 = arith.constant 0 : i32
    return %arg0, %arg1 : i32, i32
  }
}

</mosaic_0001>

<llo_original>
// kernel: _classifier_forward.1
$region0: #{_classifier_forward.1}
  #allocation0 [shape = 'u32[]', space=smem, size = 0x4, offset = 0x4, fixed_abs, tag = 'smem constant byte address 0x4 - core index']
  #allocation1 [shape = 'u32[144,128]{1,0:T(1,128)}', space=vmem, size = 0x12000, scoped, tag = 'internal scratch']
  %s0 = inlined_call_operand.hbm [shape: f32[8,32], index: 0, kind: input, shape index: {}]
  %s1 = inlined_call_operand.hbm [shape: f32[32,128], index: 1, kind: input, shape index: {}]
  %s2 = inlined_call_operand.vmem [shape: f32[1,128], index: 2, kind: input, shape index: {}]
  %s3 = inlined_call_operand.vmem [shape: f32[8,128], index: 3, kind: output, shape index: {}]
  %s4 = sld [smem:[#allocation0]]
  $region30: #{_classifier_forward.1} parent=0
    _
  %s6 = ssub.s32 1, %s4
  %s7 = scalar_select 0, %s6, %s4
  $region1: #{_classifier_forward.1} parent=0
    #allocation2 [shape = 'u8[4096]{0}', space=vmem, size = 0x1000, scoped, tag = 'input window, operand 0, single buffered']
    #allocation3 [shape = 's32[1]{0}', space=sflag, size = 0x4, scoped, tag = 'scoped memory for _classifier_forward.1']
    #allocation4 [shape = 'u8[16384]{0}', space=vmem, size = 0x4000, scoped, tag = 'input window, operand 1, single buffered']
    #allocation5 [shape = 's32[1]{0}', space=sflag, size = 0x4, scoped, tag = 'scoped memory for _classifier_forward.1']
    %8 = vsyncpa [#allocation3], 0
    %9 = vsyncpa [#allocation5], 0
    // Predicated region
    $region2: #{_classifier_forward.1} parent=1 // pred_check
      _
    $region3: #{_classifier_forward.1} parent=1 // pred_check_branch
      %11 = sbr.rel (0) target = $region5
    $region4: #{_classifier_forward.1} parent=1 // pred_region
      %s13 = ssub.s32 128, 128
      %14 = vsyncadd [#allocation3], %s13
      %s16 = sshll.u32 [#allocation2], 4
      %s17 = int_to_ptr.vmem [resolvable:$true] %s16
      %19 = dma.hbm_to_vmem [thread:$0]  %s0, 128, %s17, [#allocation3]
    $region5: #{_classifier_forward.1} parent=1 // pred_fallthru
      _
    // Predicated region
    $region6: #{_classifier_forward.1} parent=1 // pred_check
      _
    $region7: #{_classifier_forward.1} parent=1 // pred_check_branch
      %21 = sbr.rel (0) target = $region9
    $region8: #{_classifier_forward.1} parent=1 // pred_region
      %s23 = ssub.s32 512, 512
      %24 = vsyncadd [#allocation5], %s23
      %s25 = sshll.u32 [#allocation4], 4
      %s26 = int_to_ptr.vmem [resolvable:$true] %s25
      %31 = dma.hbm_to_vmem [thread:$0]  %s1, 512, %s26, [#allocation5], 128, 128, 8
    $region9: #{_classifier_forward.1} parent=1 // pred_fallthru
      _
    // Predicated region
    $region10: #{_classifier_forward.1} parent=1 // pred_check
      _
    $region11: #{_classifier_forward.1} parent=1 // pred_check_branch
      %33 = sbr.rel (0) target = $region13
    $region12: #{_classifier_forward.1} parent=1 // pred_region
      _
    $region13: #{_classifier_forward.1} parent=1 // pred_fallthru
      _
    // Predicated region
    $region14: #{_classifier_forward.1} parent=1 // pred_check
      _
    $region15: #{_classifier_forward.1} parent=1 // pred_check_branch
      %35 = sbr.rel (0) target = $region17
    $region16: #{_classifier_forward.1} parent=1 // pred_region
      %36 = dma.done [#allocation3], 128
    $region17: #{_classifier_forward.1} parent=1 // pred_fallthru
      _
    // Predicated region
    $region18: #{_classifier_forward.1} parent=1 // pred_check
      _
    $region19: #{_classifier_forward.1} parent=1 // pred_check_branch
      %38 = sbr.rel (0) target = $region21
    $region20: #{_classifier_forward.1} parent=1 // pred_region
      %39 = dma.done [#allocation5], 512
    $region21: #{_classifier_forward.1} parent=1 // pred_fallthru
      _
    %v40 = vld [vmem:[#allocation2] sm:$0xff]
    %v41 = vld [vmem:[#allocation4] sm:$0xff]
    %v42 = vld [vmem:[#allocation4 + $0x8] sm:$0xff]
    %v43 = vld [vmem:[#allocation4 + $0x10] sm:$0xff]
    %v44 = vld [vmem:[#allocation4 + $0x18] sm:$0xff]
    %v45 = vld [vmem:[%s2] sm:$0x1]
    %v47 = vlaneseq
    %v48 = vshrl.u32 %v47, 7
    %v49 = vsub.s32 0, %v48
    %v50 = vrot.slane %v45, %v49
    %vm52 = vcmask 261120
    %v54 = vsel %vm52, %v40, 0
    %56 = vmatprep.subr.mxu0 0.0
    %57 = vmatpush1.msra.mxu0 0.0
    %58 = vmatprep.subr.mxu0 0.0
    %59 = vmatpush1.msra.mxu0 0.0
    %60 = vmatprep.subr.mxu0 0.0
    %61 = vmatpush1.msra.mxu0 0.0
    %62 = vmatprep.subr.mxu0 0.0
    %63 = vmatpush1.msra.mxu0 0.0
    %64 = vmatprep.subr.mxu0 0.0
    %65 = vmatpush1.msra.mxu0 0.0
    %66 = vmatprep.subr.mxu0 0.0
    %67 = vmatpush1.msra.mxu0 0.0
    %68 = vmatprep.subr.mxu0 0.0
    %69 = vmatpush1.msra.mxu0 0.0
    %70 = vmatprep.subr.mxu0 0.0
    %71 = vmatpush1.msra.mxu0 0.0
    %72 = vmatprep.subr.mxu0 0.0
    %73 = vmatpush1.msra.mxu0 0.0
    %74 = vmatprep.subr.mxu0 0.0
    %75 = vmatpush1.msra.mxu0 0.0
    %76 = vmatprep.subr.mxu0 0.0
    %77 = vmatpush1.msra.mxu0 0.0
    %78 = vmatprep.subr.mxu0 0.0
    %79 = vmatpush1.msra.mxu0 0.0
    %80 = vmatprep.subr.mxu0 0.0
    %81 = vmatpush1.msra.mxu0 %v44
    %82 = vmatprep.subr.mxu0 0.0
    %83 = vmatpush1.msra.mxu0 %v43
    %84 = vmatprep.subr.mxu0 0.0
    %85 = vmatpush1.msra.mxu0 %v42
    %86 = vmatprep.subr.mxu0 0.0
    %87 = vmatpush1.msra.mxu0 %v41
    %88 = vmatprep.subr.mxu0 0.0
    %89 = vmatpush2.msra.mxu0 0.0
    %90 = vmatprep.subr.mxu0 0.0
    %91 = vmatpush2.msra.mxu0 0.0
    %92 = vmatprep.subr.mxu0 0.0
    %93 = vmatpush2.msra.mxu0 0.0
    %94 = vmatprep.subr.mxu0 0.0
    %95 = vmatpush2.msra.mxu0 0.0
    %96 = vmatprep.subr.mxu0 0.0
    %97 = vmatpush2.msra.mxu0 0.0
    %98 = vmatprep.subr.mxu0 0.0
    %99 = vmatpush2.msra.mxu0 0.0
    %100 = vmatprep.subr.mxu0 0.0
    %101 = vmatpush2.msra.mxu0 0.0
    %102 = vmatprep.subr.mxu0 0.0
    %103 = vmatpush2.msra.mxu0 0.0
    %104 = vmatprep.subr.mxu0 0.0
    %105 = vmatpush2.msra.mxu0 0.0
    %106 = vmatprep.subr.mxu0 0.0
    %107 = vmatpush2.msra.mxu0 0.0
    %108 = vmatprep.subr.mxu0 0.0
    %109 = vmatpush2.msra.mxu0 0.0
    %110 = vmatprep.subr.mxu0 0.0
    %111 = vmatpush2.msra.mxu0 0.0
    %112 = vmatprep.subr.mxu0 0.0
    %113 = vmatpush2.msra.mxu0 0.0
    %114 = vmatprep.subr.mxu0 0.0
    %115 = vmatpush2.msra.mxu0 0.0
    %116 = vmatprep.subr.mxu0 0.0
    %117 = vmatpush2.msra.mxu0 0.0
    %118 = vmatprep.subr.mxu0 0.0
    %119 = vmatpush2.msra.mxu0 0.0
    %120 = vmatprep.mubr.f32.mxu0 0.0
    %121 = vmatmul.mubr.f32.gmra.mxu0 %v54
    %v122 = vpop.f32.mrf.mxu0
    %v123 = vadd.f32 %v50, %v122
    %v124 = vpop.f32.mrf.mxu0
    %125 = vdwg.mxu0
    %126 = vst [vmem:[%s3] sm:$0xff] %v123
    // Predicated region
    $region22: #{_classifier_forward.1} parent=1 // pred_check
      _
    $region23: #{_classifier_forward.1} parent=1 // pred_check_branch
      %128 = sbr.rel (0) target = $region25
    $region24: #{_classifier_forward.1} parent=1 // pred_region
      _
    $region25: #{_classifier_forward.1} parent=1 // pred_fallthru
      _
    // Predicated region
    $region26: #{_classifier_forward.1} parent=1 // pred_check
      _
    $region27: #{_classifier_forward.1} parent=1 // pred_check_branch
      %130 = sbr.rel (0) target = $region29
    $region28: #{_classifier_forward.1} parent=1 // pred_region
      _
    $region29: #{_classifier_forward.1} parent=1 // pred_fallthru
      _
    %131 = vsyncpa [#allocation3], 1
    %132 = vsyncpa [#allocation5], 1

</llo_original>
